<compile_context>
chip_gen: v7x
topology: tpu7x:2x2x1
jax: 0.10.0
libtpu: 0.0.40
codegen_flags: <defaults>
</compile_context>

<pallas_src>
import functools

import jax
import jax.numpy as jnp
import numpy as np
from jax.experimental import pallas as pl
from jax.experimental.pallas import tpu as pltpu

K = 7            # deformable conv kernel size
PAD = 3
KK = K * K       # 49 taps
C2 = 2           # channels of the [avg, max] stack


# ----------------------------------------------------------------- helpers ---
def _largest_divisor(total, cap):
    best = 1
    for t in range(1, total + 1):
        if total % t == 0 and t <= cap:
            best = t
    return best


def _pick_row_tile(h, wp, max_lanes=4096):
    # rows per grid step: divisor of H, keep rows*Wp (lane width) bounded,
    # prefer ~8 rows (matches the "8 rows x W" tiling suggestion).
    divs = [r for r in range(1, h + 1) if h % r == 0 and r * wp <= max_lanes]
    if not divs:
        return 1
    small = [r for r in divs if r <= 8]
    return max(small) if small else min(divs)


# ---------------------------------------------------------------- kernel 1 ---
def _meanmax_kernel(x_ref, out_ref):
    # x_ref: [1, C, T]   out_ref: [1, 2, T]   (T spatial positions on lanes)
    x = x_ref[0]
    out_ref[0, 0, :] = jnp.mean(x, axis=0)
    out_ref[0, 1, :] = jnp.max(x, axis=0)


def channel_mean_max(x):
    n, c, h, w = x.shape
    hw = h * w
    t = _largest_divisor(hw, 2048)
    x3 = x.reshape(n, c, hw)
    out = pl.pallas_call(
        _meanmax_kernel,
        out_shape=jax.ShapeDtypeStruct((n, 2, hw), x.dtype),
        grid=(n, hw // t),
        in_specs=[pl.BlockSpec((1, c, t), lambda i, j: (i, 0, j))],
        out_specs=pl.BlockSpec((1, 2, t), lambda i, j: (i, 0, j)),
        compiler_params=pltpu.CompilerParams(
            dimension_semantics=("parallel", "parallel")),
    )(x3)
    return out.reshape(n, 2, h, w)


# ---------------------------------------------------------------- kernel 2 ---
def _deform_sa_kernel(x2p_ref, wmod_ref, bmod_ref, wreg_ref, breg_ref,
                      out_ref, flat_ref, p_ref, *, rows, wp, rwp):
    # x2p_ref : [1, 2, Hp, Wp] zero-padded [avg,max] image (whole image in VMEM)
    # wmod_ref: [49, 98]   bmod_ref: [49, 1]
    # wreg_ref: [2, 49]    breg_ref: [1, 1]
    # out_ref : [1, 1, rows*wp]    (padded-width flat row tile, lane-dense)
    # flat_ref: [2, (rows+7)*wp]   row-major flattened window of this tile
    # p_ref   : [98, rows*wp]      in-kernel im2col (lane axis = spatial)
    row0 = pl.program_id(1) * rows

    # 1) flatten this tile's (rows+7)-row window of the padded image:
    #    flat[c, j*wp + k] = x2p[c, row0 + j, k]
    for c in range(C2):
        for j in range(rows + K):
            flat_ref[c, j * wp:(j + 1) * wp] = x2p_ref[0, c, row0 + j, :]

    # 2) in-kernel im2col: tap (c, kh, kw) is a *static contiguous* slice of
    #    the flat window (padded-width trick; garbage columns are discarded
    #    by the wrapper).
    for c in range(C2):
        flat_c = flat_ref[c, :]                     # [(rows+7)*wp]
        for kh in range(K):
            for kw in range(K):
                off = kh * wp + kw
                p_ref[c * KK + kh * K + kw, :] = flat_c[off:off + rwp]

    p = p_ref[...]                                  # [98, rows*wp]
    p0 = p[:KK, :]
    p1 = p[KK:, :]

    # modulator conv as one MXU matmul, then 2*sigmoid -> mask
    logits = jnp.dot(wmod_ref[...], p,
                     preferred_element_type=jnp.float32) + bmod_ref[...]
    mask = 2.0 / (1.0 + jnp.exp(-logits))           # [49, rows*wp]

    # TODO(synk): offset_conv is constant-initialized to zero (weights + bias),
    # so deform_conv2d samples on the integer grid; fractional bilinear
    # sampling for nonzero offsets is not implemented.

    # masked regular 7x7 conv; result stays lane-dense [1, rows*wp]
    wr = wreg_ref[...]                              # [2, 49]
    out = (jnp.dot(wr[0:1, :], mask * p0, preferred_element_type=jnp.float32)
           + jnp.dot(wr[1:2, :], mask * p1, preferred_element_type=jnp.float32)
           + breg_ref[...])
    out_ref[0, 0, :] = out[0, :]


def deform_spatial_attention(x, params):
    x = x.astype(jnp.float32)
    n, c, h, w = x.shape
    wp = w + 2 * PAD                 # padded width  (W + 6)
    hp = h + K                       # padded height (3 top, 4 bottom)

    # channel mean / max (lane-dense, HW-tiled)
    x2 = channel_mean_max(x)                                   # [N, 2, H, W]

    # tiny 2-channel zero-padded image -- the only x2 HBM round trip
    x2p = jnp.pad(x2, ((0, 0), (0, 0), (PAD, PAD + 1), (PAD, PAD)))

    rows = _pick_row_tile(h, wp)     # output rows per grid step
    rt = h // rows
    rwp = rows * wp

    kernel = functools.partial(_deform_sa_kernel, rows=rows, wp=wp, rwp=rwp)
    out = pl.pallas_call(
        kernel,
        out_shape=jax.ShapeDtypeStruct((n, rt, rwp), jnp.float32),
        grid=(n, rt),
        in_specs=[
            pl.BlockSpec((1, C2, hp, wp), lambda i, r: (i, 0, 0, 0)),
            pl.BlockSpec((KK, C2 * KK), lambda i, r: (0, 0)),
            pl.BlockSpec((KK, 1), lambda i, r: (0, 0)),
            pl.BlockSpec((C2, KK), lambda i, r: (0, 0)),
            pl.BlockSpec((1, 1), lambda i, r: (0, 0)),
        ],
        out_specs=pl.BlockSpec((1, 1, rwp), lambda i, r: (i, r, 0)),
        scratch_shapes=[
            pltpu.VMEM((C2, (rows + K) * wp), jnp.float32),
            pltpu.VMEM((C2 * KK, rwp), jnp.float32),
        ],
        compiler_params=pltpu.CompilerParams(
            dimension_semantics=("parallel", "parallel")),
    )(x2p, params["w_mod"], params["b_mod"], params["w_reg"], params["b_reg"])

    # drop the padded-width garbage columns (tiny, once, in plain JAX)
    out = out.reshape(n, rt, rows, wp)[:, :, :, :w].reshape(n, 1, h, w)
    return out


# -------------------------------------------------------------- parameters ---
def init_params(key):
    # modulator_conv: Conv2d(2, 49, 7) -- weight & bias const-init 0
    w_mod = jnp.zeros((KK, C2, K, K), jnp.float32)
    b_mod = jnp.zeros((KK,), jnp.float32)
    # offset_conv: Conv2d(2, 98, 7) -- weight & bias const-init 0 (offsets == 0)
    w_off = jnp.zeros((2 * KK, C2, K, K), jnp.float32)
    b_off = jnp.zeros((2 * KK,), jnp.float32)
    # regular_conv: Conv2d(2, 1, 7, bias=True) -- deterministic uniform init
    k1, k2 = jax.random.split(key)
    bound = 1.0 / np.sqrt(C2 * KK)
    w_reg = jax.random.uniform(k1, (1, C2, K, K), jnp.float32, -bound, bound)
    b_reg = jax.random.uniform(k2, (1,), jnp.float32, -bound, bound)
    return {
        "w_mod": w_mod.reshape(KK, C2 * KK),     # [49, 98], tap = c*49+kh*7+kw
        "b_mod": b_mod.reshape(KK, 1),
        "w_reg": w_reg.reshape(C2, KK),          # [2, 49]
        "b_reg": b_reg.reshape(1, 1),
        "w_off": w_off, "b_off": b_off,
        "w_reg_oihw": w_reg, "b_reg_raw": b_reg,
    }


if __name__ == "__main__":
    key = jax.random.PRNGKey(0)
    kx, kp = jax.random.split(key)
    N, C, H, W = 2, 4, 16, 16
    x = jax.random.normal(kx, (N, C, H, W), jnp.float32)
    params = init_params(kp)

    out = jax.block_until_ready(deform_spatial_attention(x, params))
    assert out.shape == (N, 1, H, W)

    # --- reference 1: module at its actual init (w_mod = 0 -> mask == 1) ----
    x_avg = jnp.mean(x, axis=1, keepdims=True)
    x_max = jnp.max(x, axis=1, keepdims=True)
    x2r = jnp.concatenate([x_avg, x_max], axis=1)
    ref = jax.lax.conv_general_dilated(
        x2r, params["w_reg_oihw"], (1, 1), ((PAD, PAD), (PAD, PAD)),
        dimension_numbers=("NCHW", "OIHW", "NCHW"))
    ref = ref + params["b_reg_raw"][None, :, None, None]
    err = float(np.max(np.abs(np.asarray(out) - np.asarray(ref))))
    assert np.allclose(np.asarray(out), np.asarray(ref), atol=1e-4), err

    # --- reference 2: nonzero modulator weights exercise the mask path ------
    k3, k4 = jax.random.split(kp)
    w_mod2 = 0.05 * jax.random.normal(k3, (KK, C2, K, K), jnp.float32)
    b_mod2 = 0.05 * jax.random.normal(k4, (KK,), jnp.float32)
    params2 = dict(params)
    params2["w_mod"] = w_mod2.reshape(KK, C2 * KK)
    params2["b_mod"] = b_mod2.reshape(KK, 1)
    out2 = jax.block_until_ready(deform_spatial_attention(x, params2))

    mod = jax.lax.conv_general_dilated(
        x2r, w_mod2, (1, 1), ((PAD, PAD), (PAD, PAD)),
        dimension_numbers=("NCHW", "OIHW", "NCHW"))
    mod = mod + b_mod2[None, :, None, None]
    mask = 2.0 / (1.0 + jnp.exp(-mod))                        # [N, 49, H, W]
    x2rp = jnp.pad(x2r, ((0, 0), (0, 0), (PAD, PAD), (PAD, PAD)))
    acc = jnp.zeros((N, 1, H, W), jnp.float32)
    for ci in range(C2):
        for kh in range(K):
            for kw in range(K):
                acc = acc + (params["w_reg_oihw"][0, ci, kh, kw]
                             * mask[:, kh * K + kw][:, None]
                             * x2rp[:, ci, kh:kh + H, kw:kw + W][:, None])
    ref2 = acc + params["b_reg_raw"][None, :, None, None]
    err2 = float(np.max(np.abs(np.asarray(out2) - np.asarray(ref2))))
    assert np.allclose(np.asarray(out2), np.asarray(ref2), atol=5e-4), err2

    print("KERNEL_OK")
</pallas_src>

<mosaic_0001>
module attributes {stable_mosaic.version = 11 : i64} {
  func.func @_meanmax_kernel(%arg0: i32, %arg1: i32, %arg2: memref<1x4x256xf32, #tpu.memory_space<vmem>>, %arg3: memref<1x2x256xf32, #tpu.memory_space<vmem>>) attributes {dimension_semantics = [#tpu.dimension_semantics<parallel>, #tpu.dimension_semantics<parallel>], iteration_bounds = array<i64: 2, 1>, scalar_prefetch = 0 : i64, scratch_operands = 0 : i64, tpu.core_type = #tpu.core_type<tc>, window_params = [{transform_indices = @transform_0, window_bounds = array<i64: 1, 4, 256>}, {transform_indices = @transform_1, window_bounds = array<i64: 1, 2, 256>}]} {
    %c0 = arith.constant 0 : index
    %c0_0 = arith.constant 0 : index
    %c0_1 = arith.constant 0 : index
    %0 = vector.load %arg2[%c0, %c0_0, %c0_1] : memref<1x4x256xf32, #tpu.memory_space<vmem>>, vector<1x4x256xf32>
    %1 = vector.shape_cast %0 : vector<1x4x256xf32> to vector<4x256xf32>
    %cst = arith.constant dense<0.000000e+00> : vector<256xf32>
    %2 = vector.multi_reduction <add>, %1, %cst [0] : vector<4x256xf32> to vector<256xf32>
    %cst_2 = arith.constant 4.000000e+00 : f32
    %3 = vector.broadcast %cst_2 : f32 to vector<256xf32>
    %4 = arith.divf %2, %3 : vector<256xf32>
    %c0_3 = arith.constant 0 : index
    %c0_4 = arith.constant 0 : index
    %c0_5 = arith.constant 0 : index
    %5 = vector.load %arg3[%c0_3, %c0_4, %c0_5] : memref<1x2x256xf32, #tpu.memory_space<vmem>>, vector<1x1x256xf32>
    %6 = vector.shape_cast %5 : vector<1x1x256xf32> to vector<256xf32>
    %7 = vector.shape_cast %4 : vector<256xf32> to vector<1x1x256xf32>
    tpu.vector_store %arg3[%c0_3, %c0_4, %c0_5], %7 {strides = array<i32>} : memref<1x2x256xf32, #tpu.memory_space<vmem>>, vector<1x1x256xf32>,
    %cst_6 = arith.constant dense<0xFF800000> : vector<256xf32>
    %8 = vector.multi_reduction <maximumf>, %1, %cst_6 [0] : vector<4x256xf32> to vector<256xf32>
    %c0_7 = arith.constant 0 : index
    %c1 = arith.constant 1 : index
    %c0_8 = arith.constant 0 : index
    %9 = vector.load %arg3[%c0_7, %c1, %c0_8] : memref<1x2x256xf32, #tpu.memory_space<vmem>>, vector<1x1x256xf32>
    %10 = vector.shape_cast %9 : vector<1x1x256xf32> to vector<256xf32>
    %11 = vector.shape_cast %8 : vector<256xf32> to vector<1x1x256xf32>
    tpu.vector_store %arg3[%c0_7, %c1, %c0_8], %11 {strides = array<i32>} : memref<1x2x256xf32, #tpu.memory_space<vmem>>, vector<1x1x256xf32>,
    return
  }
  func.func @transform_0(%arg0: i32, %arg1: i32) -> (i32, i32, i32) {
    %c0_i32 = arith.constant 0 : i32
    %c0_i32_0 = arith.constant 0 : i32
    return %arg0, %c0_i32, %arg1 : i32, i32, i32
  }
  func.func @transform_1(%arg0: i32, %arg1: i32) -> (i32, i32, i32) {
    %c0_i32 = arith.constant 0 : i32
    %c0_i32_0 = arith.constant 0 : i32
    return %arg0, %c0_i32, %arg1 : i32, i32, i32
  }
}

</mosaic_0001>

<llo_original>
// kernel: tpu_custom_call.1
$region0: #{tpu_custom_call.1}
  #allocation0 [shape = 'u32[]', space=smem, size = 0x4, offset = 0x4, fixed_abs, tag = 'smem constant byte address 0x4 - core index']
  #allocation1 [shape = 'u32[144,128]{1,0:T(1,128)}', space=vmem, size = 0x12000, scoped, tag = 'internal scratch']
  %s0 = inlined_call_operand.hbm [shape: f32[2,4,256], index: 0, kind: input, shape index: {}]
  %s1 = inlined_call_operand.hbm [shape: f32[2,2,256], index: 1, kind: output, shape index: {}]
  %s2 = sld [smem:[#allocation0]]
  $region41: #{tpu_custom_call.1} parent=0
    _
  %s4 = ssub.s32 1, %s2
  %s5 = scalar_select 0, %s4, %s2
  $region1: #{tpu_custom_call.1} parent=0
    #allocation2 [shape = 'u8[8192]{0}', space=vmem, size = 0x2000, scoped, tag = 'input window, operand 0']
    #allocation3 [shape = 's32[2]{0}', space=sflag, size = 0x8, scoped, tag = 'scoped memory for tpu_custom_call.1']
    #allocation4 [shape = 's32[2]{0}', space=sflag, size = 0x8, scoped, tag = 'scoped memory for tpu_custom_call.1']
    #allocation5 [shape = 'u8[4096]{0}', space=vmem, size = 0x1000, scoped, tag = 'output window, operand 0']
    %6 = vsyncpa [#allocation3], 0
    %s7 = scalar_lea.sflag [#allocation3], 1
    %8 = vsyncpa %s7, 0
    %9 = vsyncpa [#allocation4], 0
    %s10 = scalar_lea.sflag [#allocation4], 1
    %11 = vsyncpa %s10, 0
    loop: start=0, step=1, limit=4
    $region2: #{tpu_custom_call.1} parent=1 // loop_pre_header
      _
    $region3: #{tpu_custom_call.1} parent=1 // loop_header
      %s13 = sphi 0, %s17
      %p14 = scmp.ge.s32.totalorder %s13, 4
      %s20 = sphi 0, %s32
      %s21 = sphi 0, %s28
      %s22 = sphi 0, %s20
      %s23 = sphi 0, %s21
      %s24 = sphi 0, %s22
      %s25 = sphi 0, %s23
      %s37 = sphi 0, %s39
      %s40 = sphi 0, %s37
      %s41 = sphi 0, %s40
      %s57 = sphi 0, %s41
      %s65 = sphi 0, %s67
      %s68 = sphi 0, %s65
      %s69 = sphi 0, %s68
      %s85 = sphi 0, %s69
    $region4: #{tpu_custom_call.1} parent=1 // loop_header_branch
      %16 = sbr.rel (%p14) target = $region8
    $region5: #{tpu_custom_call.1} parent=1 // loop_body
      %s18 = ssub.s32 %s13, 1
      %s19 = ssub.s32 %s13, 2
      %s26 = sadd.s32 1, %s21
      %p27 = scmp.ge.s32.totalorder %s26, 1
      %s28 = scalar_select %p27, 0, %s26
      %s29 = sadd.s32 1, %s20
      %s30 = scalar_select %p27, %s29, %s20
      %p31 = scmp.ge.s32.totalorder %s30, 2
      %s32 = scalar_select %p31, 0, %s30
      %s33 = ssub.s32 %s20, %s32
      %s34 = ssub.s32 %s21, %s28
      %s35 = sor.u32 %s33, %s34
      %p36 = scmp.eq.s32.totalorder %s35, 0
      %s38 = sadd.s32 %s37, 1
      %s39 = scalar_select %p36, %s37, %s38
      %p42 = pneg %p36
      %p43 = scmp.eq.s32.totalorder %s13, 1
      %p44 = por %p42, %p43
      %p45 = scmp.ne.s32.totalorder %s37, %s40
      %p46 = scmp.eq.s32.totalorder %s13, 0
      %p47 = por %p45, %p46
      %p48 = scmp.ne.s32.totalorder %s37, %s40
      %p49 = scmp.eq.s32.totalorder %s18, 1
      %p50 = por %p48, %p49
      %p51 = scmp.ne.s32.totalorder %s40, %s41
      %p52 = scmp.eq.s32.totalorder %s18, 0
      %p53 = por %p51, %p52
      %p54 = scmp.ne.s32.totalorder %s40, %s41
      %p55 = scmp.eq.s32.totalorder %s19, 1
      %p56 = por %p54, %p55
      %p58 = scmp.ne.s32.totalorder %s41, %s57
      %p59 = scmp.eq.s32.totalorder %s19, 0
      %p60 = por %p58, %p59
      %s61 = ssub.s32 %s20, %s32
      %s62 = ssub.s32 %s21, %s28
      %s63 = sor.u32 %s61, %s62
      %p64 = scmp.eq.s32.totalorder %s63, 0
      %s66 = sadd.s32 %s65, 1
      %s67 = scalar_select %p64, %s65, %s66
      %p70 = pneg %p64
      %p71 = scmp.eq.s32.totalorder %s13, 1
      %p72 = por %p70, %p71
      %p73 = scmp.ne.s32.totalorder %s65, %s68
      %p74 = scmp.eq.s32.totalorder %s13, 0
      %p75 = por %p73, %p74
      %p76 = scmp.ne.s32.totalorder %s65, %s68
      %p77 = scmp.eq.s32.totalorder %s18, 1
      %p78 = por %p76, %p77
      %p79 = scmp.ne.s32.totalorder %s68, %s69
      %p80 = scmp.eq.s32.totalorder %s18, 0
      %p81 = por %p79, %p80
      %p82 = scmp.ne.s32.totalorder %s68, %s69
      %p83 = scmp.eq.s32.totalorder %s19, 1
      %p84 = por %p82, %p83
      %p86 = scmp.ne.s32.totalorder %s69, %s85
      %p87 = scmp.eq.s32.totalorder %s19, 0
      %p88 = por %p86, %p87
      %p89 = scmp.le.s32.totalorder 1, %s13
      %p90 = scmp.lt.s32.totalorder %s13, 3
      %p91 = pnand %p89, %p90
      %p92 = pneg %p91
      // Predicated region
      $region9: #{tpu_custom_call.1} parent=5 // pred_check
        _
      $region10: #{tpu_custom_call.1} parent=5 // pred_check_branch
        %94 = sbr.rel (%p91) target = $region12
      $region11: #{tpu_custom_call.1} parent=5 // pred_region
        %s95 = ssub.s32 %s13, 1
      $region12: #{tpu_custom_call.1} parent=5 // pred_fallthru
        _
      %p96 = scmp.lt.s32.totalorder %s13, 2
      // Predicated region
      $region13: #{tpu_custom_call.1} parent=5 // pred_check
        %p97 = pneg %p96
      $region14: #{tpu_custom_call.1} parent=5 // pred_check_branch
        %99 = sbr.rel (%p97) target = $region16
      $region15: #{tpu_custom_call.1} parent=5 // pred_region
        // Predicated region
        $region17: #{tpu_custom_call.1} parent=15 // pred_check
          %p100 = pneg %p47
        $region18: #{tpu_custom_call.1} parent=15 // pred_check_branch
          %102 = sbr.rel (%p100) target = $region20
        $region19: #{tpu_custom_call.1} parent=15 // pred_region
          %s103 = sand.u32 %s37, 1
          %s104 = scalar_lea.sflag [#allocation3], %s103
          %s105 = sand.u32 %s37, 1
          %s106 = smul.addr %s105, 8
          %s107 = scalar_lea.vmem [#allocation2], %s106
          %s108 = smul.u32 2, %s21
          %s110 = ssub.s32 128, 128
          %111 = vsyncadd %s104, %s110
          %s112 = smul.addr %s20, 2
          %s113 = sadd.s32 %s108, %s112
          %s114 = smul.addr %s113, 64
          %s115 = scalar_lea.hbm %s0, %s114
          %s117 = sshll.u32 %s107, 4
          %s118 = int_to_ptr.vmem [resolvable:$true] %s117
          %120 = dma.hbm_to_vmem [thread:$0]  %s115, 128, %s118, %s104
        $region20: #{tpu_custom_call.1} parent=15 // pred_fallthru
          _
      $region16: #{tpu_custom_call.1} parent=5 // pred_fallthru
        _
      %p121 = scmp.le.s32.totalorder 1, %s13
      %p122 = scmp.lt.s32.totalorder %s13, 3
      %p123 = pnand %p121, %p122
      %p124 = pneg %p123
      // Predicated region
      $region21: #{tpu_custom_call.1} parent=5 // pred_check
        _
      $region22: #{tpu_custom_call.1} parent=5 // pred_check_branch
        %126 = sbr.rel (%p123) target = $region24
      $region23: #{tpu_custom_call.1} parent=5 // pred_region
        %s127 = ssub.s32 %s13, 1
        %s128 = sand.u32 %s40, 1
        %s129 = scalar_lea.sflag [#allocation3], %s128
        %s130 = sand.u32 %s40, 1
        %s131 = smul.addr %s130, 8
        %s132 = scalar_lea.vmem [#allocation2], %s131
        // Predicated region
        $region25: #{tpu_custom_call.1} parent=23 // pred_check
          %p133 = pneg %p53
        $region26: #{tpu_custom_call.1} parent=23 // pred_check_branch
          %135 = sbr.rel (%p133) target = $region28
        $region27: #{tpu_custom_call.1} parent=23 // pred_region
          %136 = dma.done %s129, 128
        $region28: #{tpu_custom_call.1} parent=23 // pred_fallthru
          _
        %s137 = sand.u32 %s40, 1
        %s138 = scalar_lea.sflag [#allocation3], %s137
        %s139 = sand.u32 %s40, 1
        %s140 = smul.addr %s139, 8
        %s141 = scalar_lea.vmem [#allocation2], %s140
        %p142 = pneg %p53
        %p143 = pneg %p50
        %p144 = pneg %p81
        %p145 = pneg %p78
        %s146 = sand.u32 %s68, 1
        %s147 = scalar_lea.sflag [#allocation4], %s146
        %s148 = sand.u32 %s68, 1
        %s149 = smul.addr %s148, 4
        %s150 = scalar_lea.vmem [#allocation5], %s149
        %s151 = smul.u32 2, %s23
        %s152 = smul.u32 2, %s23
        %v153 = vld [vmem:[%s132] sm:$0xff]
        %v155 = vcombine.high %v153, %v153
        %vm157 = vcmask 1043456
        %v158 = vsel %vm157, %v153, 0.0
        %v159 = vrot.slane %v158, 4
        %v160 = vadd.f32 %v158, %v159
        %v161 = vrot.slane %v160, 2
        %v162 = vadd.f32 %v160, %v161
        %v163 = vrot.slane %v162, 1
        %v164 = vadd.f32 %v162, %v163
        %v165 = vsel %vm157, %v155, 0.0
        %v166 = vrot.slane %v165, 4
        %v167 = vadd.f32 %v165, %v166
        %v168 = vrot.slane %v167, 2
        %v169 = vadd.f32 %v167, %v168
        %v170 = vrot.slane %v169, 1
        %v171 = vadd.f32 %v169, %v170
        %v172 = vrcp.pop 4.0
        %v173 = vmul.f32 %v164, %v172
        %v174 = vmul.f32 %v171, %v172
        %v177 = vcombine.low %v173, %v174
        %v179 = vunpack.c.l.s4 1966171168
        %v180 = vunpack.c.0.s8 %v179
        %v181 = vlaneseq
        %v182 = vshrl.u32 %v181, 7
        %v183 = vsub.s32 %v180, %v182
        %v184 = vrot.slane %v177, %v183
        %v186 = vunpack.c.l.s4 1966171168
        %v187 = vunpack.c.0.s8 %v186
        %v188 = vlaneseq
        %v189 = vshrl.u32 %v188, 7
        %v190 = vsub.s32 %v187, %v189
        %v191 = vrot.slane %v184, %v190
        %v193 = vlaneseq
        %vm194 = vcmp.ge.s32.totalorder %v193, 0
        %vm195 = vcmp.lt.s32.totalorder %v193, 256
        %vm196 = vmand %vm194, %vm195
        %197 = vst.msk [vmem:[%s150] ss:$2 sm:$0x3] %vm196, %v191
        %v198 = vsel %vm157, %v153, -inf
        %v199 = vrot.slane %v198, 4
        %v200 = vmax.f32 %v198, %v199
        %v201 = vrot.slane %v200, 2
        %v202 = vmax.f32 %v200, %v201
        %v203 = vrot.slane %v202, 1
        %v204 = vmax.f32 %v202, %v203
        %v205 = vsel %vm157, %v155, -inf
        %v206 = vrot.slane %v205, 4
        %v207 = vmax.f32 %v205, %v206
        %v208 = vrot.slane %v207, 2
        %v209 = vmax.f32 %v207, %v208
        %v210 = vrot.slane %v209, 1
        %v211 = vmax.f32 %v209, %v210
        %v214 = vcombine.low %v204, %v211
        %v216 = vunpack.c.l.s4 1966171168
        %v217 = vunpack.c.0.s8 %v216
        %v218 = vlaneseq
        %v219 = vshrl.u32 %v218, 7
        %v220 = vsub.s32 %v217, %v219
        %v221 = vrot.slane %v214, %v220
        %v223 = vunpack.c.l.s4 1966171168
        %v224 = vunpack.c.0.s8 %v223
        %v225 = vlaneseq
        %v226 = vshrl.u32 %v225, 7
        %v227 = vsub.s32 %v224, %v226
        %v228 = vrot.slane %v221, %v227
        %s230 = scalar_lea.vmem %s150, 1 [#allocation5]
        %231 = vst.msk [vmem:[%s230] ss:$2 sm:$0x3] %vm196, %v228
        %s232 = sand.u32 %s68, 1
        %s233 = scalar_lea.sflag [#allocation4], %s232
        %s234 = sand.u32 %s68, 1
        %s235 = smul.addr %s234, 4
        %s236 = scalar_lea.vmem [#allocation5], %s235
        // Predicated region
        $region29: #{tpu_custom_call.1} parent=23 // pred_check
          %p237 = pneg %p78
        $region30: #{tpu_custom_call.1} parent=23 // pred_check_branch
          %239 = sbr.rel (%p237) target = $region32
        $region31: #{tpu_custom_call.1} parent=23 // pred_region
          %s240 = smul.u32 2, %s23
          %s242 = ssub.s32 64, 64
          %243 = vsyncadd %s233, %s242
          %s244 = smul.addr %s22, 2
          %s245 = sadd.s32 %s240, %s244
          %s246 = smul.addr %s245, 32
          %s247 = scalar_lea.hbm %s1, %s246
          %s249 = sshll.u32 %s236, 4
          %s250 = int_to_ptr.vmem [resolvable:$true] %s249
          %252 = dma.vmem_to_hbm [thread:$0]  %s250, 64, %s247, %s233
        $region32: #{tpu_custom_call.1} parent=23 // pred_fallthru
          _
      $region24: #{tpu_custom_call.1} parent=5 // pred_fallthru
        _
      %p253 = scmp.le.s32.totalorder 2, %s13
      // Predicated region
      $region33: #{tpu_custom_call.1} parent=5 // pred_check
        %p254 = pneg %p253
      $region34: #{tpu_custom_call.1} parent=5 // pred_check_branch
        %256 = sbr.rel (%p254) target = $region36
      $region35: #{tpu_custom_call.1} parent=5 // pred_region
        %s257 = ssub.s32 %s13, 2
        // Predicated region
        $region37: #{tpu_custom_call.1} parent=35 // pred_check
          %p258 = pneg %p84
        $region38: #{tpu_custom_call.1} parent=35 // pred_check_branch
          %260 = sbr.rel (%p258) target = $region40
        $region39: #{tpu_custom_call.1} parent=35 // pred_region
          %s261 = sand.u32 %s69, 1
          %s262 = scalar_lea.sflag [#allocation4], %s261
          %s263 = sand.u32 %s69, 1
          %s264 = smul.addr %s263, 4
          %s265 = scalar_lea.vmem [#allocation5], %s264
          %266 = dma.done %s262, 64
        $region40: #{tpu_custom_call.1} parent=35 // pred_fallthru
          _
      $region36: #{tpu_custom_call.1} parent=5 // pred_fallthru
        _
    $region6: #{tpu_custom_call.1} parent=1 // loop_footer
      %s17 = sadd.s32 1, %s13
    $region7: #{tpu_custom_call.1} parent=1 // loop_footer_branch
      %12 = sbr.rel target = $region3
    $region8: #{tpu_custom_call.1} parent=1 // loop_exit
      _
    %267 = vsyncpa [#allocation3], 1
    %s268 = scalar_lea.sflag [#allocation3], 1
    %269 = vsyncpa %s268, 1
    %270 = vsyncpa [#allocation4], 1
    %s271 = scalar_lea.sflag [#allocation4], 1
    %272 = vsyncpa %s271, 1

</llo_original>
